<compile_context>
chip_gen: v6e
topology: v6e:2x2x1
jax: 0.10.0
libtpu: 0.0.40
codegen_flags: <defaults>
</compile_context>

<pallas_src>
import math

import jax
import jax.numpy as jnp
from jax.experimental import pallas as pl
from jax.experimental.pallas import tpu as pltpu

PI = 0.5
SIGMA_1 = math.exp(-0.0)
SIGMA_2 = math.exp(-6.0)

HIDDEN = 128        # hidden width of layers 1 & 2 (native MXU lane width)
MAX_TM = 1024       # max batch tile rows
SMALL_BATCH = 64    # below this, plain XLA beats pallas_call fixed overhead


def _round_up(v, m):
    return ((v + m - 1) // m) * m


def _cdiv(a, b):
    return -(-a // b)


def _pick_tm(b, in_dim):
    """Batch tile rows: >=4 grid steps when batch allows (2 TCs x 2 pipelined
    steps on v7x), multiple of 8, capped by MAX_TM and a VMEM budget for the
    double-buffered f32 x tile."""
    tm = _round_up(max(1, _cdiv(b, 4)), 8)
    tm = min(tm, MAX_TM)
    bytes_per_row = max(1, in_dim * 4 * 2)          # f32, double-buffered
    cap = max(8, ((8 << 20) // bytes_per_row) // 8 * 8)
    return max(8, min(tm, cap))


# ----------------------------- Pallas kernel --------------------------------
def bbbbnn_kernel(x_ref, w1_ref, b1_ref, w2_ref, b2_ref, w3_ref, b3_ref, o_ref):
    # Layer 1: cast the x tile to bf16 in-kernel (no extra wrapper HBM pass),
    # bf16 MXU matmul with f32 accumulation; bias add + ReLU stay f32.
    x = x_ref[...].astype(jnp.bfloat16)
    h = jnp.dot(x, w1_ref[...], preferred_element_type=jnp.float32)
    h = jnp.maximum(h + b1_ref[...], 0.0)                 # (TM,128) + (1,128) bcast
    # Layer 2
    h = jnp.dot(h.astype(jnp.bfloat16), w2_ref[...], preferred_element_type=jnp.float32)
    h = jnp.maximum(h + b2_ref[...], 0.0)
    # Layer 3: W3 kept at its true (128, n_classes) width -> tiny output stream.
    o = jnp.dot(h.astype(jnp.bfloat16), w3_ref[...], preferred_element_type=jnp.float32)
    o_ref[...] = (o + b3_ref[...]).astype(o_ref.dtype)


def bbbbnn_forward(x, params):
    """x: any shape (B, ...) -> flattened to (B, in_dim). Returns (B, n_classes) f32."""
    b = x.shape[0]
    x2d = x.reshape(b, -1)
    if x2d.dtype not in (jnp.float32, jnp.bfloat16):
        x2d = x2d.astype(jnp.float32)
    in_dim = x2d.shape[1]

    w1, b1, w2, b2, w3, b3 = (
        params["w1_mu"], params["b1_mu"],
        params["w2_mu"], params["b2_mu"],
        params["w3_mu"], params["b3_mu"],
    )
    n_classes = w3.shape[0]
    hidden = w1.shape[0]                                   # 128

    # ---- tiny-batch fast path: wrapper glue + call overhead dominate ----
    if b <= SMALL_BATCH:
        xf = x2d.astype(jnp.float32)
        h = jnp.maximum(xf @ w1.T + b1, 0.0)
        h = jnp.maximum(h @ w2.T + b2, 0.0)
        return h @ w3.T + b3

    # ---- tiny, VMEM-resident operands (transposed once, bf16 for the MXU) ----
    w1t = w1.T.astype(jnp.bfloat16)                        # (in_dim, 128)
    w2t = w2.T.astype(jnp.bfloat16)                        # (128, 128)
    w3t = w3.T.astype(jnp.bfloat16)                        # (128, n_classes)
    b1r = b1[None, :].astype(jnp.float32)                  # (1, 128)
    b2r = b2[None, :].astype(jnp.float32)                  # (1, 128)
    b3r = b3[None, :].astype(jnp.float32)                  # (1, n_classes)

    tm = _pick_tm(b, in_dim)
    grid = (_cdiv(b, tm),)

    flops = 2 * b * (in_dim * hidden + hidden * hidden + hidden * n_classes)
    bytes_accessed = (
        b * in_dim * x2d.dtype.itemsize            # x stream
        + (w1t.size + w2t.size + w3t.size) * 2     # resident bf16 weights
        + (2 * hidden + n_classes) * 4             # biases
        + b * n_classes * 4                        # f32 logits writeback
    )

    out = pl.pallas_call(
        bbbbnn_kernel,
        out_shape=jax.ShapeDtypeStruct((b, n_classes), jnp.float32),
        grid_spec=pltpu.PrefetchScalarGridSpec(
            num_scalar_prefetch=0,
            grid=grid,
            in_specs=[
                pl.BlockSpec((tm, in_dim), lambda i: (i, 0)),        # x tile (pipelined; ragged last tile -> masked writes)
                pl.BlockSpec((in_dim, hidden), lambda i: (0, 0)),    # W1 (resident)
                pl.BlockSpec((1, hidden), lambda i: (0, 0)),         # b1
                pl.BlockSpec((hidden, hidden), lambda i: (0, 0)),    # W2
                pl.BlockSpec((1, hidden), lambda i: (0, 0)),         # b2
                pl.BlockSpec((hidden, n_classes), lambda i: (0, 0)), # W3 (true width)
                pl.BlockSpec((1, n_classes), lambda i: (0, 0)),      # b3
            ],
            out_specs=pl.BlockSpec((tm, n_classes), lambda i: (i, 0)),
        ),
        compiler_params=pltpu.CompilerParams(
            dimension_semantics=("parallel",),
        ),
        cost_estimate=pl.CostEstimate(
            flops=flops, transcendentals=0, bytes_accessed=bytes_accessed),
    )(x2d, w1t, b1r, w2t, b2r, w3t, b3r)

    return out


# ------------- side-effect log-prob attributes (plain JAX glue) --------------
def _mixture_log_prob(w):
    # log( PI * N(w;0,s1) + (1-PI) * N(w;0,s2) ) summed, in a stable logsumexp form.
    def log_normal(v, sigma):
        return -0.5 * (v / sigma) ** 2 - math.log(sigma * math.sqrt(2.0 * math.pi))
    la = jnp.log(PI) + log_normal(w, SIGMA_1)
    lb = jnp.log(1.0 - PI) + log_normal(w, SIGMA_2)
    m = jnp.maximum(la, lb)
    return jnp.sum(m + jnp.log(jnp.exp(la - m) + jnp.exp(lb - m)))


def _variational_log_prob(mu, rho):
    # evaluated at sample == mu (eval mode), so the quadratic term vanishes
    sigma = jnp.log1p(jnp.exp(rho))
    return jnp.sum(-math.log(math.sqrt(2.0 * math.pi)) - jnp.log(sigma))


def bbbbnn_log_probs(params):
    log_prior = 0.0
    log_var_post = 0.0
    for l in ("1", "2", "3"):
        for kind in ("w", "b"):
            mu = params[f"{kind}{l}_mu"]
            rho = params[f"{kind}{l}_rho"]
            log_prior = log_prior + _mixture_log_prob(mu)
            log_var_post = log_var_post + _variational_log_prob(mu, rho)
    return log_prior, log_var_post


# ----------------------------- parameter init --------------------------------
def init_params(key, in_dim, n_classes):
    dims = [(HIDDEN, in_dim), (HIDDEN, HIDDEN), (n_classes, HIDDEN)]
    params = {}
    keys = jax.random.split(key, 12)
    ki = 0
    for i, (out_f, in_f) in enumerate(dims, start=1):
        params[f"w{i}_mu"] = jax.random.uniform(keys[ki], (out_f, in_f), jnp.float32, -0.2, 0.2); ki += 1
        params[f"w{i}_rho"] = jax.random.uniform(keys[ki], (out_f, in_f), jnp.float32, -5.0, -4.0); ki += 1
        params[f"b{i}_mu"] = jax.random.uniform(keys[ki], (out_f,), jnp.float32, -0.2, 0.2); ki += 1
        params[f"b{i}_rho"] = jax.random.uniform(keys[ki], (out_f,), jnp.float32, -5.0, -4.0); ki += 1
    return params


# ----------------------------- references ------------------------------------
def _ref_bf16(x2d, params):
    xb = x2d.astype(jnp.bfloat16)
    w1b = params["w1_mu"].T.astype(jnp.bfloat16)
    w2b = params["w2_mu"].T.astype(jnp.bfloat16)
    w3b = params["w3_mu"].T.astype(jnp.bfloat16)
    h = jnp.maximum(jnp.dot(xb, w1b, preferred_element_type=jnp.float32) + params["b1_mu"], 0.0)
    h = jnp.maximum(jnp.dot(h.astype(jnp.bfloat16), w2b, preferred_element_type=jnp.float32) + params["b2_mu"], 0.0)
    return jnp.dot(h.astype(jnp.bfloat16), w3b, preferred_element_type=jnp.float32) + params["b3_mu"]


def _ref_f32(x2d, params):
    h = jnp.maximum(x2d @ params["w1_mu"].T + params["b1_mu"], 0.0)
    h = jnp.maximum(h @ params["w2_mu"].T + params["b2_mu"], 0.0)
    return h @ params["w3_mu"].T + params["b3_mu"]


if __name__ == "__main__":
    key = jax.random.PRNGKey(0)
    k_param, k_x1, k_x2, k_x3 = jax.random.split(key, 4)

    feat_a, feat_b = 4, 8            # x.view(len(x), -1) -> in_dim = 32
    in_dim = feat_a * feat_b
    n_classes = 4
    params = init_params(k_param, in_dim, n_classes)

    # --- Pallas path: batch tiled into a 4-step grid (2 steps / TC on v7x) ---
    batch = 256
    x = jax.random.normal(k_x1, (batch, feat_a, feat_b), dtype=jnp.float32)
    out = jax.block_until_ready(bbbbnn_forward(x, params))
    assert out.shape == (batch, n_classes)
    x2d = x.reshape(batch, -1)
    assert jnp.allclose(out, _ref_bf16(x2d, params), atol=2e-2, rtol=2e-2)   # tight (same bf16 math)
    assert jnp.allclose(out, _ref_f32(x2d, params), atol=5e-2, rtol=5e-2)    # loose (bf16 MXU operands)

    # --- Pallas path, ragged last batch tile (out-of-bounds rows masked on store) ---
    batch_r = 100
    xr = jax.random.normal(k_x2, (batch_r, feat_a, feat_b), dtype=jnp.float32)
    out_r = jax.block_until_ready(bbbbnn_forward(xr, params))
    assert out_r.shape == (batch_r, n_classes)
    assert jnp.allclose(out_r, _ref_bf16(xr.reshape(batch_r, -1), params), atol=2e-2, rtol=2e-2)

    # --- tiny-batch fast path (plain XLA f32, matches torch eval forward) ---
    xs = jax.random.normal(k_x3, (2, feat_a, feat_b), dtype=jnp.float32)
    out_s = jax.block_until_ready(bbbbnn_forward(xs, params))
    assert out_s.shape == (2, n_classes)
    assert jnp.allclose(out_s, _ref_f32(xs.reshape(2, -1), params), atol=1e-5, rtol=1e-5)

    # side-effect attributes (not part of forward's return value)
    lp, lvp = bbbbnn_log_probs(params)
    jax.block_until_ready((lp, lvp))

    print("KERNEL_OK")
</pallas_src>

<mosaic_0001>
module attributes {stable_mosaic.version = 11 : i64} {
  func.func @bbbbnn_kernel(%arg0: i32, %arg1: memref<64x32xf32, #tpu.memory_space<vmem>>, %arg2: memref<32x128xbf16, #tpu.memory_space<vmem>>, %arg3: memref<1x128xf32, #tpu.memory_space<vmem>>, %arg4: memref<128x128xbf16, #tpu.memory_space<vmem>>, %arg5: memref<1x128xf32, #tpu.memory_space<vmem>>, %arg6: memref<128x4xbf16, #tpu.memory_space<vmem>>, %arg7: memref<1x4xf32, #tpu.memory_space<vmem>>, %arg8: memref<64x4xf32, #tpu.memory_space<vmem>>) attributes {dimension_semantics = [#tpu.dimension_semantics<parallel>], iteration_bounds = array<i64: 4>, scalar_prefetch = 0 : i64, scratch_operands = 0 : i64, tpu.core_type = #tpu.core_type<tc>, window_params = [{transform_indices = @transform_0, window_bounds = array<i64: 64, 32>}, {pipeline_mode = #tpu.pipeline_mode<synchronous>, transform_indices = @transform_1, window_bounds = array<i64: 32, 128>}, {pipeline_mode = #tpu.pipeline_mode<synchronous>, transform_indices = @transform_2, window_bounds = array<i64: 1, 128>}, {pipeline_mode = #tpu.pipeline_mode<synchronous>, transform_indices = @transform_3, window_bounds = array<i64: 128, 128>}, {pipeline_mode = #tpu.pipeline_mode<synchronous>, transform_indices = @transform_4, window_bounds = array<i64: 1, 128>}, {pipeline_mode = #tpu.pipeline_mode<synchronous>, transform_indices = @transform_5, window_bounds = array<i64: 128, 4>}, {pipeline_mode = #tpu.pipeline_mode<synchronous>, transform_indices = @transform_6, window_bounds = array<i64: 1, 4>}, {transform_indices = @transform_7, window_bounds = array<i64: 64, 4>}]} {
    %c0 = arith.constant 0 : index
    %c0_0 = arith.constant 0 : index
    %0 = vector.load %arg1[%c0, %c0_0] : memref<64x32xf32, #tpu.memory_space<vmem>>, vector<64x32xf32>
    %1 = arith.truncf %0 : vector<64x32xf32> to vector<64x32xbf16>
    %c0_1 = arith.constant 0 : index
    %c0_2 = arith.constant 0 : index
    %2 = vector.load %arg2[%c0_1, %c0_2] : memref<32x128xbf16, #tpu.memory_space<vmem>>, vector<32x128xbf16>
    %cst = arith.constant dense<0.000000e+00> : vector<64x128xf32>
    %3 = tpu.matmul %1, %2, %cst {dimension_numbers = #tpu.dot_dimension_numbers<[1], [0], [0], [1], [0, 0, 1, 1], [], []>} : vector<64x32xbf16>, vector<32x128xbf16>, vector<64x128xf32> -> vector<64x128xf32>
    %c0_3 = arith.constant 0 : index
    %c0_4 = arith.constant 0 : index
    %4 = vector.load %arg3[%c0_3, %c0_4] : memref<1x128xf32, #tpu.memory_space<vmem>>, vector<1x128xf32>
    %5 = vector.broadcast %4 : vector<1x128xf32> to vector<64x128xf32>
    %6 = arith.addf %3, %5 : vector<64x128xf32>
    %cst_5 = arith.constant 0.000000e+00 : f32
    %7 = vector.broadcast %cst_5 : f32 to vector<64x128xf32>
    %8 = arith.maximumf %6, %7 : vector<64x128xf32>
    %9 = arith.truncf %8 : vector<64x128xf32> to vector<64x128xbf16>
    %c0_6 = arith.constant 0 : index
    %c0_7 = arith.constant 0 : index
    %10 = vector.load %arg4[%c0_6, %c0_7] : memref<128x128xbf16, #tpu.memory_space<vmem>>, vector<128x128xbf16>
    %cst_8 = arith.constant dense<0.000000e+00> : vector<64x128xf32>
    %11 = tpu.matmul %9, %10, %cst_8 {dimension_numbers = #tpu.dot_dimension_numbers<[1], [0], [0], [1], [0, 0, 1, 1], [], []>} : vector<64x128xbf16>, vector<128x128xbf16>, vector<64x128xf32> -> vector<64x128xf32>
    %c0_9 = arith.constant 0 : index
    %c0_10 = arith.constant 0 : index
    %12 = vector.load %arg5[%c0_9, %c0_10] : memref<1x128xf32, #tpu.memory_space<vmem>>, vector<1x128xf32>
    %13 = vector.broadcast %12 : vector<1x128xf32> to vector<64x128xf32>
    %14 = arith.addf %11, %13 : vector<64x128xf32>
    %cst_11 = arith.constant 0.000000e+00 : f32
    %15 = vector.broadcast %cst_11 : f32 to vector<64x128xf32>
    %16 = arith.maximumf %14, %15 : vector<64x128xf32>
    %17 = arith.truncf %16 : vector<64x128xf32> to vector<64x128xbf16>
    %c0_12 = arith.constant 0 : index
    %c0_13 = arith.constant 0 : index
    %18 = vector.load %arg6[%c0_12, %c0_13] : memref<128x4xbf16, #tpu.memory_space<vmem>>, vector<128x4xbf16>
    %cst_14 = arith.constant dense<0.000000e+00> : vector<64x4xf32>
    %19 = tpu.matmul %17, %18, %cst_14 {dimension_numbers = #tpu.dot_dimension_numbers<[1], [0], [0], [1], [0, 0, 1, 1], [], []>} : vector<64x128xbf16>, vector<128x4xbf16>, vector<64x4xf32> -> vector<64x4xf32>
    %c0_15 = arith.constant 0 : index
    %c0_16 = arith.constant 0 : index
    %20 = vector.load %arg7[%c0_15, %c0_16] : memref<1x4xf32, #tpu.memory_space<vmem>>, vector<1x4xf32>
    %21 = vector.broadcast %20 : vector<1x4xf32> to vector<64x4xf32>
    %22 = arith.addf %19, %21 : vector<64x4xf32>
    %c0_17 = arith.constant 0 : index
    %c0_18 = arith.constant 0 : index
    %23 = vector.load %arg8[%c0_17, %c0_18] : memref<64x4xf32, #tpu.memory_space<vmem>>, vector<64x4xf32>
    tpu.vector_store %arg8[%c0_17, %c0_18], %22 {strides = array<i32>} : memref<64x4xf32, #tpu.memory_space<vmem>>, vector<64x4xf32>,
    return
  }
  func.func @transform_0(%arg0: i32) -> (i32, i32) {
    %c0_i32 = arith.constant 0 : i32
    %c0_i32_0 = arith.constant 0 : i32
    return %arg0, %c0_i32 : i32, i32
  }
  func.func @transform_1(%arg0: i32) -> (i32, i32) {
    %c0_i32 = arith.constant 0 : i32
    %c0_i32_0 = arith.constant 0 : i32
    %c0_i32_1 = arith.constant 0 : i32
    return %c0_i32, %c0_i32_0 : i32, i32
  }
  func.func @transform_2(%arg0: i32) -> (i32, i32) {
    %c0_i32 = arith.constant 0 : i32
    %c0_i32_0 = arith.constant 0 : i32
    %c0_i32_1 = arith.constant 0 : i32
    return %c0_i32, %c0_i32_0 : i32, i32
  }
  func.func @transform_3(%arg0: i32) -> (i32, i32) {
    %c0_i32 = arith.constant 0 : i32
    %c0_i32_0 = arith.constant 0 : i32
    %c0_i32_1 = arith.constant 0 : i32
    return %c0_i32, %c0_i32_0 : i32, i32
  }
  func.func @transform_4(%arg0: i32) -> (i32, i32) {
    %c0_i32 = arith.constant 0 : i32
    %c0_i32_0 = arith.constant 0 : i32
    %c0_i32_1 = arith.constant 0 : i32
    return %c0_i32, %c0_i32_0 : i32, i32
  }
  func.func @transform_5(%arg0: i32) -> (i32, i32) {
    %c0_i32 = arith.constant 0 : i32
    %c0_i32_0 = arith.constant 0 : i32
    %c0_i32_1 = arith.constant 0 : i32
    return %c0_i32, %c0_i32_0 : i32, i32
  }
  func.func @transform_6(%arg0: i32) -> (i32, i32) {
    %c0_i32 = arith.constant 0 : i32
    %c0_i32_0 = arith.constant 0 : i32
    %c0_i32_1 = arith.constant 0 : i32
    return %c0_i32, %c0_i32_0 : i32, i32
  }
  func.func @transform_7(%arg0: i32) -> (i32, i32) {
    %c0_i32 = arith.constant 0 : i32
    %c0_i32_0 = arith.constant 0 : i32
    return %arg0, %c0_i32 : i32, i32
  }
}

</mosaic_0001>

<llo_original>
// kernel: tpu_custom_call.1
$region0: #{tpu_custom_call.1}
  #allocation0 [shape = 'u32[]', space=smem, size = 0x4, offset = 0x4, fixed_abs, tag = 'smem constant byte address 0x4 - core index']
  #allocation1 [shape = 'u32[144,128]{1,0:T(1,128)}', space=vmem, size = 0x12000, scoped, tag = 'internal scratch']
  %s0 = inlined_call_operand.vmem [shape: f32[256,32], index: 0, kind: input, shape index: {}]
  %s1 = inlined_call_operand.vmem [shape: bf16[32,128], index: 1, kind: input, shape index: {}]
  %s2 = inlined_call_operand.vmem [shape: f32[1,128], index: 2, kind: input, shape index: {}]
  %s3 = inlined_call_operand.vmem [shape: bf16[128,128], index: 3, kind: input, shape index: {}]
  %s4 = inlined_call_operand.vmem [shape: f32[1,128], index: 4, kind: input, shape index: {}]
  %s5 = inlined_call_operand.vmem [shape: bf16[128,4], index: 5, kind: input, shape index: {}]
  %s6 = inlined_call_operand.vmem [shape: f32[1,4], index: 6, kind: input, shape index: {}]
  %s7 = inlined_call_operand.vmem [shape: f32[256,4], index: 7, kind: output, shape index: {}]
  %s8 = sld [smem:[#allocation0]]
  $region61: #{tpu_custom_call.1} parent=0
    _
  %s10 = ssub.s32 1, %s8
  %s11 = scalar_select 0, %s10, %s8
  loop: start=0, step=1, limit=6
  $region2: #{tpu_custom_call.1} parent=0 // loop_pre_header
    _
  $region3: #{tpu_custom_call.1} parent=0 // loop_header
    %s13 = sphi 0, %s17
    %p14 = scmp.ge.s32.totalorder %s13, 6
    %s23 = sphi 0, %s25
    %s26 = sphi 0, %s23
    %s27 = sphi 0, %s26
    %s43 = sphi 0, %s27
    %s47 = sphi 0, %s47
    %s49 = sphi 0, %s47
    %s50 = sphi 0, %s49
    %s64 = sphi 0, %s50
    %s68 = sphi 0, %s68
    %s70 = sphi 0, %s68
    %s71 = sphi 0, %s70
    %s85 = sphi 0, %s71
    %s89 = sphi 0, %s89
    %s91 = sphi 0, %s89
    %s92 = sphi 0, %s91
    %s106 = sphi 0, %s92
    %s110 = sphi 0, %s110
    %s112 = sphi 0, %s110
    %s113 = sphi 0, %s112
    %s127 = sphi 0, %s113
    %s131 = sphi 0, %s131
    %s133 = sphi 0, %s131
    %s134 = sphi 0, %s133
    %s148 = sphi 0, %s134
    %s152 = sphi 0, %s152
    %s154 = sphi 0, %s152
    %s155 = sphi 0, %s154
    %s169 = sphi 0, %s155
    %s175 = sphi 0, %s177
    %s178 = sphi 0, %s175
    %s179 = sphi 0, %s178
    %s195 = sphi 0, %s179
  $region4: #{tpu_custom_call.1} parent=0 // loop_header_branch
    %16 = sbr.rel (%p14) target = $region8
  $region5: #{tpu_custom_call.1} parent=0 // loop_body
    %s18 = ssub.s32 %s13, 1
    %s19 = ssub.s32 %s13, 2
    %s20 = sadd.s32 %s13, 1
    %s21 = ssub.s32 %s13, %s20
    %p22 = scmp.eq.s32.totalorder %s21, 0
    %s24 = sadd.s32 %s23, 1
    %s25 = scalar_select %p22, %s23, %s24
    %p28 = pneg %p22
    %p29 = scmp.eq.s32.totalorder %s13, 3
    %p30 = por %p28, %p29
    %p31 = scmp.ne.s32.totalorder %s23, %s26
    %p32 = scmp.eq.s32.totalorder %s13, 0
    %p33 = por %p31, %p32
    %p34 = scmp.ne.s32.totalorder %s23, %s26
    %p35 = scmp.eq.s32.totalorder %s18, 3
    %p36 = por %p34, %p35
    %p37 = scmp.ne.s32.totalorder %s26, %s27
    %p38 = scmp.eq.s32.totalorder %s18, 0
    %p39 = por %p37, %p38
    %p40 = scmp.ne.s32.totalorder %s26, %s27
    %p41 = scmp.eq.s32.totalorder %s19, 3
    %p42 = por %p40, %p41
    %p44 = scmp.ne.s32.totalorder %s27, %s43
    %p45 = scmp.eq.s32.totalorder %s19, 0
    %p46 = por %p44, %p45
    %s48 = sadd.s32 %s47, 1
    %p51 = scmp.eq.s32.totalorder %s13, 3
    %p52 = scmp.ne.s32.totalorder %s47, %s49
    %p53 = scmp.eq.s32.totalorder %s13, 0
    %p54 = por %p52, %p53
    %p55 = scmp.ne.s32.totalorder %s47, %s49
    %p56 = scmp.eq.s32.totalorder %s18, 3
    %p57 = por %p55, %p56
    %p58 = scmp.ne.s32.totalorder %s49, %s50
    %p59 = scmp.eq.s32.totalorder %s18, 0
    %p60 = por %p58, %p59
    %p61 = scmp.ne.s32.totalorder %s49, %s50
    %p62 = scmp.eq.s32.totalorder %s19, 3
    %p63 = por %p61, %p62
    %p65 = scmp.ne.s32.totalorder %s50, %s64
    %p66 = scmp.eq.s32.totalorder %s19, 0
    %p67 = por %p65, %p66
    %s69 = sadd.s32 %s68, 1
    %p72 = scmp.eq.s32.totalorder %s13, 3
    %p73 = scmp.ne.s32.totalorder %s68, %s70
    %p74 = scmp.eq.s32.totalorder %s13, 0
    %p75 = por %p73, %p74
    %p76 = scmp.ne.s32.totalorder %s68, %s70
    %p77 = scmp.eq.s32.totalorder %s18, 3
    %p78 = por %p76, %p77
    %p79 = scmp.ne.s32.totalorder %s70, %s71
    %p80 = scmp.eq.s32.totalorder %s18, 0
    %p81 = por %p79, %p80
    %p82 = scmp.ne.s32.totalorder %s70, %s71
    %p83 = scmp.eq.s32.totalorder %s19, 3
    %p84 = por %p82, %p83
    %p86 = scmp.ne.s32.totalorder %s71, %s85
    %p87 = scmp.eq.s32.totalorder %s19, 0
    %p88 = por %p86, %p87
    %s90 = sadd.s32 %s89, 1
    %p93 = scmp.eq.s32.totalorder %s13, 3
    %p94 = scmp.ne.s32.totalorder %s89, %s91
    %p95 = scmp.eq.s32.totalorder %s13, 0
    %p96 = por %p94, %p95
    %p97 = scmp.ne.s32.totalorder %s89, %s91
    %p98 = scmp.eq.s32.totalorder %s18, 3
    %p99 = por %p97, %p98
    %p100 = scmp.ne.s32.totalorder %s91, %s92
    %p101 = scmp.eq.s32.totalorder %s18, 0
    %p102 = por %p100, %p101
    %p103 = scmp.ne.s32.totalorder %s91, %s92
    %p104 = scmp.eq.s32.totalorder %s19, 3
    %p105 = por %p103, %p104
    %p107 = scmp.ne.s32.totalorder %s92, %s106
    %p108 = scmp.eq.s32.totalorder %s19, 0
    %p109 = por %p107, %p108
    %s111 = sadd.s32 %s110, 1
    %p114 = scmp.eq.s32.totalorder %s13, 3
    %p115 = scmp.ne.s32.totalorder %s110, %s112
    %p116 = scmp.eq.s32.totalorder %s13, 0
    %p117 = por %p115, %p116
    %p118 = scmp.ne.s32.totalorder %s110, %s112
    %p119 = scmp.eq.s32.totalorder %s18, 3
    %p120 = por %p118, %p119
    %p121 = scmp.ne.s32.totalorder %s112, %s113
    %p122 = scmp.eq.s32.totalorder %s18, 0
    %p123 = por %p121, %p122
    %p124 = scmp.ne.s32.totalorder %s112, %s113
    %p125 = scmp.eq.s32.totalorder %s19, 3
    %p126 = por %p124, %p125
    %p128 = scmp.ne.s32.totalorder %s113, %s127
    %p129 = scmp.eq.s32.totalorder %s19, 0
    %p130 = por %p128, %p129
    %s132 = sadd.s32 %s131, 1
    %p135 = scmp.eq.s32.totalorder %s13, 3
    %p136 = scmp.ne.s32.totalorder %s131, %s133
    %p137 = scmp.eq.s32.totalorder %s13, 0
    %p138 = por %p136, %p137
    %p139 = scmp.ne.s32.totalorder %s131, %s133
    %p140 = scmp.eq.s32.totalorder %s18, 3
    %p141 = por %p139, %p140
    %p142 = scmp.ne.s32.totalorder %s133, %s134
    %p143 = scmp.eq.s32.totalorder %s18, 0
    %p144 = por %p142, %p143
    %p145 = scmp.ne.s32.totalorder %s133, %s134
    %p146 = scmp.eq.s32.totalorder %s19, 3
    %p147 = por %p145, %p146
    %p149 = scmp.ne.s32.totalorder %s134, %s148
    %p150 = scmp.eq.s32.totalorder %s19, 0
    %p151 = por %p149, %p150
    %s153 = sadd.s32 %s152, 1
    %p156 = scmp.eq.s32.totalorder %s13, 3
    %p157 = scmp.ne.s32.totalorder %s152, %s154
    %p158 = scmp.eq.s32.totalorder %s13, 0
    %p159 = por %p157, %p158
    %p160 = scmp.ne.s32.totalorder %s152, %s154
    %p161 = scmp.eq.s32.totalorder %s18, 3
    %p162 = por %p160, %p161
    %p163 = scmp.ne.s32.totalorder %s154, %s155
    %p164 = scmp.eq.s32.totalorder %s18, 0
    %p165 = por %p163, %p164
    %p166 = scmp.ne.s32.totalorder %s154, %s155
    %p167 = scmp.eq.s32.totalorder %s19, 3
    %p168 = por %p166, %p167
    %p170 = scmp.ne.s32.totalorder %s155, %s169
    %p171 = scmp.eq.s32.totalorder %s19, 0
    %p172 = por %p170, %p171
    %s173 = ssub.s32 %s13, %s20
    %p174 = scmp.eq.s32.totalorder %s173, 0
    %s176 = sadd.s32 %s175, 1
    %s177 = scalar_select %p174, %s175, %s176
    %p180 = pneg %p174
    %p181 = scmp.eq.s32.totalorder %s13, 3
    %p182 = por %p180, %p181
    %p183 = scmp.ne.s32.totalorder %s175, %s178
    %p184 = scmp.eq.s32.totalorder %s13, 0
    %p185 = por %p183, %p184
    %p186 = scmp.ne.s32.totalorder %s175, %s178
    %p187 = scmp.eq.s32.totalorder %s18, 3
    %p188 = por %p186, %p187
    %p189 = scmp.ne.s32.totalorder %s178, %s179
    %p190 = scmp.eq.s32.totalorder %s18, 0
    %p191 = por %p189, %p190
    %p192 = scmp.ne.s32.totalorder %s178, %s179
    %p193 = scmp.eq.s32.totalorder %s19, 3
    %p194 = por %p192, %p193
    %p196 = scmp.ne.s32.totalorder %s179, %s195
    %p197 = scmp.eq.s32.totalorder %s19, 0
    %p198 = por %p196, %p197
    %p199 = scmp.le.s32.totalorder 1, %s13
    %p200 = scmp.lt.s32.totalorder %s13, 5
    %p201 = pnand %p199, %p200
    %p202 = pneg %p201
    // Predicated region
    $region9: #{tpu_custom_call.1} parent=5 // pred_check
      _
    $region10: #{tpu_custom_call.1} parent=5 // pred_check_branch
      %204 = sbr.rel (%p201) target = $region12
    $region11: #{tpu_custom_call.1} parent=5 // pred_region
      %s205 = ssub.s32 %s13, 1
      // Predicated region
      $region13: #{tpu_custom_call.1} parent=11 // pred_check
        %p206 = pneg %p60
      $region14: #{tpu_custom_call.1} parent=11 // pred_check_branch
        %208 = sbr.rel (%p206) target = $region16
      $region15: #{tpu_custom_call.1} parent=11 // pred_region
        _
      $region16: #{tpu_custom_call.1} parent=11 // pred_fallthru
        _
      // Predicated region
      $region17: #{tpu_custom_call.1} parent=11 // pred_check
        %p209 = pneg %p81
      $region18: #{tpu_custom_call.1} parent=11 // pred_check_branch
        %211 = sbr.rel (%p209) target = $region20
      $region19: #{tpu_custom_call.1} parent=11 // pred_region
        _
      $region20: #{tpu_custom_call.1} parent=11 // pred_fallthru
        _
      // Predicated region
      $region21: #{tpu_custom_call.1} parent=11 // pred_check
        %p212 = pneg %p102
      $region22: #{tpu_custom_call.1} parent=11 // pred_check_branch
        %214 = sbr.rel (%p212) target = $region24
      $region23: #{tpu_custom_call.1} parent=11 // pred_region
        _
      $region24: #{tpu_custom_call.1} parent=11 // pred_fallthru
        _
      // Predicated region
      $region25: #{tpu_custom_call.1} parent=11 // pred_check
        %p215 = pneg %p123
      $region26: #{tpu_custom_call.1} parent=11 // pred_check_branch
        %217 = sbr.rel (%p215) target = $region28
      $region27: #{tpu_custom_call.1} parent=11 // pred_region
        _
      $region28: #{tpu_custom_call.1} parent=11 // pred_fallthru
        _
      // Predicated region
      $region29: #{tpu_custom_call.1} parent=11 // pred_check
        %p218 = pneg %p144
      $region30: #{tpu_custom_call.1} parent=11 // pred_check_branch
        %220 = sbr.rel (%p218) target = $region32
      $region31: #{tpu_custom_call.1} parent=11 // pred_region
        _
      $region32: #{tpu_custom_call.1} parent=11 // pred_fallthru
        _
      // Predicated region
      $region33: #{tpu_custom_call.1} parent=11 // pred_check
        %p221 = pneg %p165
      $region34: #{tpu_custom_call.1} parent=11 // pred_check_branch
        %223 = sbr.rel (%p221) target = $region36
      $region35: #{tpu_custom_call.1} parent=11 // pred_region
        _
      $region36: #{tpu_custom_call.1} parent=11 // pred_fallthru
        _
    $region12: #{tpu_custom_call.1} parent=5 // pred_fallthru
      _
    %p224 = scmp.lt.s32.totalorder %s13, 4
    // Predicated region
    $region37: #{tpu_custom_call.1} parent=5 // pred_check
      %p225 = pneg %p224
    $region38: #{tpu_custom_call.1} parent=5 // pred_check_branch
      %227 = sbr.rel (%p225) target = $region40
    $region39: #{tpu_custom_call.1} parent=5 // pred_region
      // Predicated region
      $region41: #{tpu_custom_call.1} parent=39 // pred_check
        %p228 = pneg %p33
      $region42: #{tpu_custom_call.1} parent=39 // pred_check_branch
        %230 = sbr.rel (%p228) target = $region44
      $region43: #{tpu_custom_call.1} parent=39 // pred_region
        %s231 = smul.u32 8, %s13
        %p232 = scmp.lt.s32.totalorder %s231, 31
        %s233 = scalar_select %p232, %s231, 31
        %s234 = smul.addr %s233, 8
        %s235 = scalar_lea.vmem %s0, %s234
        %s236 = smul.u32 8, %s13
      $region44: #{tpu_custom_call.1} parent=39 // pred_fallthru
        _
    $region40: #{tpu_custom_call.1} parent=5 // pred_fallthru
      _
    %p237 = scmp.le.s32.totalorder 1, %s13
    %p238 = scmp.lt.s32.totalorder %s13, 5
    %p239 = pnand %p237, %p238
    %p240 = pneg %p239
    // Predicated region
    $region45: #{tpu_custom_call.1} parent=5 // pred_check
      _
    $region46: #{tpu_custom_call.1} parent=5 // pred_check_branch
      %242 = sbr.rel (%p239) target = $region48
    $region47: #{tpu_custom_call.1} parent=5 // pred_region
      %s243 = ssub.s32 %s13, 1
      %s244 = smul.u32 8, %s18
      %p245 = scmp.lt.s32.totalorder %s244, 31
      %s246 = scalar_select %p245, %s244, 31
      %s247 = smul.addr %s246, 8
      %s248 = scalar_lea.vmem %s0, %s247
      %p249 = pneg %p39
      %p250 = pneg %p36
      %p251 = pneg %p60
      %p252 = pneg %p57
      %p253 = pneg %p81
      %p254 = pneg %p78
      %p255 = pneg %p102
      %p256 = pneg %p99
      %p257 = pneg %p123
      %p258 = pneg %p120
      %p259 = pneg %p144
      %p260 = pneg %p141
      %p261 = pneg %p165
      %p262 = pneg %p162
      %p263 = pneg %p191
      %p264 = pneg %p188
      %s265 = smul.u32 8, %s18
      %p266 = scmp.lt.s32.totalorder %s265, 31
      %s267 = scalar_select %p266, %s265, 31
      %s268 = smul.addr %s267, 8
      %s269 = scalar_lea.vmem %s7, %s268
      %s270 = smul.u32 8, %s18
      %p271 = scmp.lt.s32.totalorder %s270, 31
      %s272 = scalar_select %p271, %s270, 31
      %s273 = smul.addr %s272, 8
      %s274 = scalar_lea.vmem %s0, %s273
      %s275 = smul.u32 8, %s18
      %s276 = smul.u32 8, %s18
      %p277 = scmp.lt.s32.totalorder %s276, 31
      %s278 = scalar_select %p277, %s276, 31
      %s279 = smul.addr %s278, 8
      %s280 = scalar_lea.vmem %s7, %s279
      %s281 = smul.u32 8, %s18
      %v283 = vld [vmem:[%s274] sm:$0xff]
      %v284 = vld [vmem:[%s274 + $0x8] sm:$0xff]
      %v285 = vld [vmem:[%s274 + $0x10] sm:$0xff]
      %v286 = vld [vmem:[%s274 + $0x18] sm:$0xff]
      %v287 = vld [vmem:[%s274 + $0x20] sm:$0xff]
      %v288 = vld [vmem:[%s274 + $0x28] sm:$0xff]
      %v289 = vld [vmem:[%s274 + $0x30] sm:$0xff]
      %v290 = vld [vmem:[%s274 + $0x38] sm:$0xff]
      %v291 = vpack.c.bf16 %v284, %v283
      %v292 = vpack.c.bf16 %v286, %v285
      %v293 = vpack.c.bf16 %v288, %v287
      %v294 = vpack.c.bf16 %v290, %v289
      %v295 = vld [vmem:[%s1] sm:$0xf]
      %v296 = vld [vmem:[%s1 + $0x4] sm:$0xf]
      %v297 = vld [vmem:[%s1 + $0x8] sm:$0xf]
      %v298 = vld [vmem:[%s1 + $0xc] sm:$0xf]
      %v299 = vld [vmem:[%s2] sm:$0x1]
      %v301 = vlaneseq
      %v302 = vshrl.u32 %v301, 7
      %v303 = vsub.s32 0, %v302
      %v304 = vrot.slane %v299, %v303
      %v310 = vunpack.c.l.b16 %v295
      %v311 = vunpack.c.l.b16 %v296
      %v312 = vunpack.c.l.b16 %v297
      %v313 = vunpack.c.l.b16 %v298
      %v314 = vpack.c.b16 %v311, %v310
      %v315 = vpack.c.b16 %v313, %v312
      %vm318 = vcmask 261120
      %v320 = vsel %vm318, %v291, 0
      %v323 = vsel %vm318, %v292, 0
      %v326 = vsel %vm318, %v293, 0
      %v329 = vsel %vm318, %v294, 0
      %331 = vmatprep.subr.bf16.mxu0 0
      %332 = vmatpush1.bf16.msra.mxu0 0
      %333 = vmatprep.subr.bf16.mxu0 0
      %334 = vmatpush1.bf16.msra.mxu0 0
      %335 = vmatprep.subr.bf16.mxu0 0
      %336 = vmatpush1.bf16.msra.mxu0 0
      %337 = vmatprep.subr.bf16.mxu0 0
      %338 = vmatpush1.bf16.msra.mxu0 0
      %339 = vmatprep.subr.bf16.mxu0 0
      %340 = vmatpush1.bf16.msra.mxu0 0
      %341 = vmatprep.subr.bf16.mxu0 0
      %342 = vmatpush1.bf16.msra.mxu0 0
      %343 = vmatprep.subr.bf16.mxu0 0
      %344 = vmatpush1.bf16.msra.mxu0 %v315
      %345 = vmatprep.subr.bf16.mxu0 0
      %346 = vmatpush1.bf16.msra.mxu0 %v314
      %347 = vmatprep.subr.bf16.mxu0 0
      %348 = vmatpush2.bf16.msra.mxu0 0
      %349 = vmatprep.subr.bf16.mxu0 0
      %350 = vmatpush2.bf16.msra.mxu0 0
      %351 = vmatprep.subr.bf16.mxu0 0
      %352 = vmatpush2.bf16.msra.mxu0 0
      %353 = vmatprep.subr.bf16.mxu0 0
      %354 = vmatpush2.bf16.msra.mxu0 0
      %355 = vmatprep.subr.bf16.mxu0 0
      %356 = vmatpush2.bf16.msra.mxu0 0
      %357 = vmatprep.subr.bf16.mxu0 0
      %358 = vmatpush2.bf16.msra.mxu0 0
      %359 = vmatprep.subr.bf16.mxu0 0
      %360 = vmatpush2.bf16.msra.mxu0 0
      %361 = vmatprep.subr.bf16.mxu0 0
      %362 = vmatpush2.bf16.msra.mxu0 0
      %363 = vmatprep.mubr.bf16.mxu0 0
      %364 = vmatmul.mubr.bf16.gmra.mxu0 %v320
      %v365 = vpop.f32.mrf.mxu0
      %v366 = vadd.f32 %v304, %v365
      %v367 = vpop.f32.mrf.mxu0
      %v368 = vpop.f32.mrf.mxu0
      %v369 = vadd.f32 %v304, %v368
      %v370 = vpop.f32.mrf.mxu0
      %371 = vmatprep.mubr.bf16.mxu0 0
      %372 = vmatmul.mubr.bf16.gmra.mxu0 %v323
      %v373 = vpop.f32.mrf.mxu0
      %v374 = vadd.f32 %v304, %v373
      %v375 = vpop.f32.mrf.mxu0
      %v376 = vpop.f32.mrf.mxu0
      %v377 = vadd.f32 %v304, %v376
      %v378 = vpop.f32.mrf.mxu0
      %379 = vmatprep.mubr.bf16.mxu0 0
      %380 = vmatmul.mubr.bf16.gmra.mxu0 %v326
      %v381 = vpop.f32.mrf.mxu0
      %v382 = vadd.f32 %v304, %v381
      %v383 = vpop.f32.mrf.mxu0
      %v384 = vpop.f32.mrf.mxu0
      %v385 = vadd.f32 %v304, %v384
      %v386 = vpop.f32.mrf.mxu0
      %387 = vmatprep.mubr.bf16.mxu0 0
      %388 = vmatmul.mubr.bf16.gmra.mxu0 %v329
      %v389 = vpop.f32.mrf.mxu0
      %v390 = vadd.f32 %v304, %v389
      %v391 = vpop.f32.mrf.mxu0
      %v392 = vpop.f32.mrf.mxu0
      %v393 = vadd.f32 %v304, %v392
      %v394 = vpop.f32.mrf.mxu0
      %395 = vdwg.mxu0
      %v396 = vmax.f32 %v366, 0.0
      %v397 = vmax.f32 %v369, 0.0
      %v398 = vmax.f32 %v374, 0.0
      %v399 = vmax.f32 %v377, 0.0
      %v400 = vmax.f32 %v382, 0.0
      %v401 = vmax.f32 %v385, 0.0
      %v402 = vmax.f32 %v390, 0.0
      %v403 = vmax.f32 %v393, 0.0
      %v404 = vpack.c.bf16 %v397, %v396
      %v405 = vpack.c.bf16 %v399, %v398
      %v406 = vpack.c.bf16 %v401, %v400
      %v407 = vpack.c.bf16 %v403, %v402
      %v408 = vld [vmem:[%s3] sm:$0xf]
      %v409 = vld [vmem:[%s3 + $0x4] sm:$0xf]
      %v410 = vld [vmem:[%s3 + $0x8] sm:$0xf]
      %v411 = vld [vmem:[%s3 + $0xc] sm:$0xf]
      %v412 = vld [vmem:[%s3 + $0x10] sm:$0xf]
      %v413 = vld [vmem:[%s3 + $0x14] sm:$0xf]
      %v414 = vld [vmem:[%s3 + $0x18] sm:$0xf]
      %v415 = vld [vmem:[%s3 + $0x1c] sm:$0xf]
      %v416 = vld [vmem:[%s3 + $0x20] sm:$0xf]
      %v417 = vld [vmem:[%s3 + $0x24] sm:$0xf]
      %v418 = vld [vmem:[%s3 + $0x28] sm:$0xf]
      %v419 = vld [vmem:[%s3 + $0x2c] sm:$0xf]
      %v420 = vld [vmem:[%s3 + $0x30] sm:$0xf]
      %v421 = vld [vmem:[%s3 + $0x34] sm:$0xf]
      %v422 = vld [vmem:[%s3 + $0x38] sm:$0xf]
      %v423 = vld [vmem:[%s3 + $0x3c] sm:$0xf]
      %v424 = vld [vmem:[%s4] sm:$0x1]
      %v426 = vlaneseq
      %v427 = vshrl.u32 %v426, 7
      %v428 = vsub.s32 0, %v427
      %v429 = vrot.slane %v424, %v428
      %v447 = vunpack.c.l.b16 %v408
      %v448 = vunpack.c.l.b16 %v409
      %v449 = vunpack.c.l.b16 %v410
      %v450 = vunpack.c.l.b16 %v411
      %v451 = vunpack.c.l.b16 %v412
      %v452 = vunpack.c.l.b16 %v413
      %v453 = vunpack.c.l.b16 %v414
      %v454 = vunpack.c.l.b16 %v415
      %v455 = vunpack.c.l.b16 %v416
      %v456 = vunpack.c.l.b16 %v417
      %v457 = vunpack.c.l.b16 %v418
      %v458 = vunpack.c.l.b16 %v419
      %v459 = vunpack.c.l.b16 %v420
      %v460 = vunpack.c.l.b16 %v421
      %v461 = vunpack.c.l.b16 %v422
      %v462 = vunpack.c.l.b16 %v423
      %v463 = vpack.c.b16 %v448, %v447
      %v464 = vpack.c.b16 %v450, %v449
      %v465 = vpack.c.b16 %v452, %v451
      %v466 = vpack.c.b16 %v454, %v453
      %v467 = vpack.c.b16 %v456, %v455
      %v468 = vpack.c.b16 %v458, %v457
      %v469 = vpack.c.b16 %v460, %v459
      %v470 = vpack.c.b16 %v462, %v461
      %479 = vmatprep.subr.bf16.mxu0 0
      %480 = vmatpush1.bf16.msra.mxu0 %v470
      %481 = vmatprep.subr.bf16.mxu0 0
      %482 = vmatpush1.bf16.msra.mxu0 %v469
      %483 = vmatprep.subr.bf16.mxu0 0
      %484 = vmatpush1.bf16.msra.mxu0 %v468
      %485 = vmatprep.subr.bf16.mxu0 0
      %486 = vmatpush1.bf16.msra.mxu0 %v467
      %487 = vmatprep.subr.bf16.mxu0 0
      %488 = vmatpush1.bf16.msra.mxu0 %v466
      %489 = vmatprep.subr.bf16.mxu0 0
      %490 = vmatpush1.bf16.msra.mxu0 %v465
      %491 = vmatprep.subr.bf16.mxu0 0
      %492 = vmatpush1.bf16.msra.mxu0 %v464
      %493 = vmatprep.subr.bf16.mxu0 0
      %494 = vmatpush1.bf16.msra.mxu0 %v463
      %495 = vmatprep.subr.bf16.mxu0 0
      %496 = vmatpush2.bf16.msra.mxu0 0
      %497 = vmatprep.subr.bf16.mxu0 0
      %498 = vmatpush2.bf16.msra.mxu0 0
      %499 = vmatprep.subr.bf16.mxu0 0
      %500 = vmatpush2.bf16.msra.mxu0 0
      %501 = vmatprep.subr.bf16.mxu0 0
      %502 = vmatpush2.bf16.msra.mxu0 0
      %503 = vmatprep.subr.bf16.mxu0 0
      %504 = vmatpush2.bf16.msra.mxu0 0
      %505 = vmatprep.subr.bf16.mxu0 0
      %506 = vmatpush2.bf16.msra.mxu0 0
      %507 = vmatprep.subr.bf16.mxu0 0
      %508 = vmatpush2.bf16.msra.mxu0 0
      %509 = vmatprep.subr.bf16.mxu0 0
      %510 = vmatpush2.bf16.msra.mxu0 0
      %511 = vmatprep.mubr.bf16.mxu0 0
      %512 = vmatmul.mubr.bf16.gmra.mxu0 %v404
      %v513 = vpop.f32.mrf.mxu0
      %v514 = vadd.f32 %v429, %v513
      %v515 = vpop.f32.mrf.mxu0
      %v516 = vpop.f32.mrf.mxu0
      %v517 = vadd.f32 %v429, %v516
      %v518 = vpop.f32.mrf.mxu0
      %519 = vmatprep.mubr.bf16.mxu0 0
      %520 = vmatmul.mubr.bf16.gmra.mxu0 %v405
      %v521 = vpop.f32.mrf.mxu0
      %v522 = vadd.f32 %v429, %v521
      %v523 = vpop.f32.mrf.mxu0
      %v524 = vpop.f32.mrf.mxu0
      %v525 = vadd.f32 %v429, %v524
      %v526 = vpop.f32.mrf.mxu0
      %527 = vmatprep.mubr.bf16.mxu0 0
      %528 = vmatmul.mubr.bf16.gmra.mxu0 %v406
      %v529 = vpop.f32.mrf.mxu0
      %v530 = vadd.f32 %v429, %v529
      %v531 = vpop.f32.mrf.mxu0
      %v532 = vpop.f32.mrf.mxu0
      %v533 = vadd.f32 %v429, %v532
      %v534 = vpop.f32.mrf.mxu0
      %535 = vmatprep.mubr.bf16.mxu0 0
      %536 = vmatmul.mubr.bf16.gmra.mxu0 %v407
      %v537 = vpop.f32.mrf.mxu0
      %v538 = vadd.f32 %v429, %v537
      %v539 = vpop.f32.mrf.mxu0
      %v540 = vpop.f32.mrf.mxu0
      %v541 = vadd.f32 %v429, %v540
      %v542 = vpop.f32.mrf.mxu0
      %543 = vdwg.mxu0
      %v544 = vmax.f32 %v514, 0.0
      %v545 = vmax.f32 %v517, 0.0
      %v546 = vmax.f32 %v522, 0.0
      %v547 = vmax.f32 %v525, 0.0
      %v548 = vmax.f32 %v530, 0.0
      %v549 = vmax.f32 %v533, 0.0
      %v550 = vmax.f32 %v538, 0.0
      %v551 = vmax.f32 %v541, 0.0
      %v552 = vpack.c.bf16 %v545, %v544
      %v553 = vpack.c.bf16 %v547, %v546
      %v554 = vpack.c.bf16 %v549, %v548
      %v555 = vpack.c.bf16 %v551, %v550
      %v556 = vld [vmem:[%s5] sm:$0xf]
      %v557 = vld [vmem:[%s5 + $0x4] sm:$0xf]
      %v558 = vld [vmem:[%s5 + $0x8] sm:$0xf]
      %v559 = vld [vmem:[%s5 + $0xc] sm:$0xf]
      %v560 = vld [vmem:[%s5 + $0x10] sm:$0xf]
      %v561 = vld [vmem:[%s5 + $0x14] sm:$0xf]
      %v562 = vld [vmem:[%s5 + $0x18] sm:$0xf]
      %v563 = vld [vmem:[%s5 + $0x1c] sm:$0xf]
      %v564 = vld [vmem:[%s5 + $0x20] sm:$0xf]
      %v565 = vld [vmem:[%s5 + $0x24] sm:$0xf]
      %v566 = vld [vmem:[%s5 + $0x28] sm:$0xf]
      %v567 = vld [vmem:[%s5 + $0x2c] sm:$0xf]
      %v568 = vld [vmem:[%s5 + $0x30] sm:$0xf]
      %v569 = vld [vmem:[%s5 + $0x34] sm:$0xf]
      %v570 = vld [vmem:[%s5 + $0x38] sm:$0xf]
      %v571 = vld [vmem:[%s5 + $0x3c] sm:$0xf]
      %v572 = vld [vmem:[%s6] sm:$0x1]
      %v574 = vlaneseq
      %v575 = vshrl.u32 %v574, 7
      %v576 = vsub.s32 0, %v575
      %v577 = vrot.slane %v572, %v576
      %v595 = vunpack.c.l.b16 %v556
      %v596 = vunpack.c.l.b16 %v557
      %v597 = vunpack.c.l.b16 %v558
      %v598 = vunpack.c.l.b16 %v559
      %v599 = vunpack.c.l.b16 %v560
      %v600 = vunpack.c.l.b16 %v561
      %v601 = vunpack.c.l.b16 %v562
      %v602 = vunpack.c.l.b16 %v563
      %v603 = vunpack.c.l.b16 %v564
      %v604 = vunpack.c.l.b16 %v565
      %v605 = vunpack.c.l.b16 %v566
      %v606 = vunpack.c.l.b16 %v567
      %v607 = vunpack.c.l.b16 %v568
      %v608 = vunpack.c.l.b16 %v569
      %v609 = vunpack.c.l.b16 %v570
      %v610 = vunpack.c.l.b16 %v571
      %v611 = vpack.c.b16 %v596, %v595
      %v612 = vpack.c.b16 %v598, %v597
      %v613 = vpack.c.b16 %v600, %v599
      %v614 = vpack.c.b16 %v602, %v601
      %v615 = vpack.c.b16 %v604, %v603
      %v616 = vpack.c.b16 %v606, %v605
      %v617 = vpack.c.b16 %v608, %v607
      %v618 = vpack.c.b16 %v610, %v609
      %627 = vmatprep.subr.bf16.mxu0 0
      %628 = vmatpush1.bf16.msra.mxu0 %v618
      %629 = vmatprep.subr.bf16.mxu0 0
      %630 = vmatpush1.bf16.msra.mxu0 %v617
      %631 = vmatprep.subr.bf16.mxu0 0
      %632 = vmatpush1.bf16.msra.mxu0 %v616
      %633 = vmatprep.subr.bf16.mxu0 0
      %634 = vmatpush1.bf16.msra.mxu0 %v615
      %635 = vmatprep.subr.bf16.mxu0 0
      %636 = vmatpush1.bf16.msra.mxu0 %v614
      %637 = vmatprep.subr.bf16.mxu0 0
      %638 = vmatpush1.bf16.msra.mxu0 %v613
      %639 = vmatprep.subr.bf16.mxu0 0
      %640 = vmatpush1.bf16.msra.mxu0 %v612
      %641 = vmatprep.subr.bf16.mxu0 0
      %642 = vmatpush1.bf16.msra.mxu0 %v611
      %643 = vmatprep.subr.bf16.mxu0 0
      %644 = vmatpush2.bf16.msra.mxu0 0
      %645 = vmatprep.subr.bf16.mxu0 0
      %646 = vmatpush2.bf16.msra.mxu0 0
      %647 = vmatprep.subr.bf16.mxu0 0
      %648 = vmatpush2.bf16.msra.mxu0 0
      %649 = vmatprep.subr.bf16.mxu0 0
      %650 = vmatpush2.bf16.msra.mxu0 0
      %651 = vmatprep.subr.bf16.mxu0 0
      %652 = vmatpush2.bf16.msra.mxu0 0
      %653 = vmatprep.subr.bf16.mxu0 0
      %654 = vmatpush2.bf16.msra.mxu0 0
      %655 = vmatprep.subr.bf16.mxu0 0
      %656 = vmatpush2.bf16.msra.mxu0 0
      %657 = vmatprep.subr.bf16.mxu0 0
      %658 = vmatpush2.bf16.msra.mxu0 0
      %659 = vmatprep.mubr.bf16.mxu0 0
      %660 = vmatmul.mubr.bf16.gmra.mxu0 %v552
      %v661 = vpop.f32.mrf.mxu0
      %v662 = vadd.f32 %v577, %v661
      %v663 = vpop.f32.mrf.mxu0
      %v664 = vpop.f32.mrf.mxu0
      %v665 = vadd.f32 %v577, %v664
      %v666 = vpop.f32.mrf.mxu0
      %667 = vmatprep.mubr.bf16.mxu0 0
      %668 = vmatmul.mubr.bf16.gmra.mxu0 %v553
      %v669 = vpop.f32.mrf.mxu0
      %v670 = vadd.f32 %v577, %v669
      %v671 = vpop.f32.mrf.mxu0
      %v672 = vpop.f32.mrf.mxu0
      %v673 = vadd.f32 %v577, %v672
      %v674 = vpop.f32.mrf.mxu0
      %675 = vmatprep.mubr.bf16.mxu0 0
      %676 = vmatmul.mubr.bf16.gmra.mxu0 %v554
      %v677 = vpop.f32.mrf.mxu0
      %v678 = vadd.f32 %v577, %v677
      %v679 = vpop.f32.mrf.mxu0
      %v680 = vpop.f32.mrf.mxu0
      %v681 = vadd.f32 %v577, %v680
      %v682 = vpop.f32.mrf.mxu0
      %683 = vmatprep.mubr.bf16.mxu0 0
      %684 = vmatmul.mubr.bf16.gmra.mxu0 %v555
      %v685 = vpop.f32.mrf.mxu0
      %v686 = vadd.f32 %v577, %v685
      %v687 = vpop.f32.mrf.mxu0
      %v688 = vpop.f32.mrf.mxu0
      %v689 = vadd.f32 %v577, %v688
      %v690 = vpop.f32.mrf.mxu0
      %691 = vdwg.mxu0
      %vm692 = vcmask 31744
      %693 = vst.msk [vmem:[%s280] sm:$0xff] %vm692, %v662
      %694 = vst.msk [vmem:[%s280 + $0x8] sm:$0xff] %vm692, %v665
      %695 = vst.msk [vmem:[%s280 + $0x10] sm:$0xff] %vm692, %v670
      %696 = vst.msk [vmem:[%s280 + $0x18] sm:$0xff] %vm692, %v673
      %697 = vst.msk [vmem:[%s280 + $0x20] sm:$0xff] %vm692, %v678
      %698 = vst.msk [vmem:[%s280 + $0x28] sm:$0xff] %vm692, %v681
      %699 = vst.msk [vmem:[%s280 + $0x30] sm:$0xff] %vm692, %v686
      %700 = vst.msk [vmem:[%s280 + $0x38] sm:$0xff] %vm692, %v689
      %s701 = smul.u32 8, %s18
      %p702 = scmp.lt.s32.totalorder %s701, 31
      %s703 = scalar_select %p702, %s701, 31
      %s704 = smul.addr %s703, 8
      %s705 = scalar_lea.vmem %s7, %s704
      // Predicated region
      $region49: #{tpu_custom_call.1} parent=47 // pred_check
        %p706 = pneg %p188
      $region50: #{tpu_custom_call.1} parent=47 // pred_check_branch
        %708 = sbr.rel (%p706) target = $region52
      $region51: #{tpu_custom_call.1} parent=47 // pred_region
        %s709 = smul.u32 8, %s18
      $region52: #{tpu_custom_call.1} parent=47 // pred_fallthru
        _
    $region48: #{tpu_custom_call.1} parent=5 // pred_fallthru
      _
    %p710 = scmp.le.s32.totalorder 2, %s13
    // Predicated region
    $region53: #{tpu_custom_call.1} parent=5 // pred_check
      %p711 = pneg %p710
    $region54: #{tpu_custom_call.1} parent=5 // pred_check_branch
      %713 = sbr.rel (%p711) target = $region56
    $region55: #{tpu_custom_call.1} parent=5 // pred_region
      %s714 = ssub.s32 %s13, 2
      // Predicated region
      $region57: #{tpu_custom_call.1} parent=55 // pred_check
        %p715 = pneg %p194
      $region58: #{tpu_custom_call.1} parent=55 // pred_check_branch
        %717 = sbr.rel (%p715) target = $region60
      $region59: #{tpu_custom_call.1} parent=55 // pred_region
        %s718 = smul.u32 8, %s19
        %p719 = scmp.lt.s32.totalorder %s718, 31
        %s720 = scalar_select %p719, %s718, 31
        %s721 = smul.addr %s720, 8
        %s722 = scalar_lea.vmem %s7, %s721
      $region60: #{tpu_custom_call.1} parent=55 // pred_fallthru
        _
    $region56: #{tpu_custom_call.1} parent=5 // pred_fallthru
      _
  $region6: #{tpu_custom_call.1} parent=0 // loop_footer
    %s17 = sadd.s32 1, %s13
  $region7: #{tpu_custom_call.1} parent=0 // loop_footer_branch
    %12 = sbr.rel target = $region3
  $region8: #{tpu_custom_call.1} parent=0 // loop_exit
    _

</llo_original>
